<compile_context>
chip_gen: v6e
topology: v6e:2x2x1
jax: 0.10.0
libtpu: 0.0.40
codegen_flags: <defaults>
</compile_context>

<pallas_src>
import functools

import jax
import jax.numpy as jnp
from jax.experimental import pallas as pl
from jax.experimental.pallas import tpu as pltpu


def _critic_kernel(st_ref, at_ref, w1s_ref, w1a_ref, b1_ref, w2_ref, b2_ref,
                   out_ref):
    # st_ref: (S, tb), at_ref: (A, tb) — batch on lanes.
    s = st_ref[...].astype(jnp.bfloat16)          # no-op if caller sends bf16
    a = at_ref[...].astype(jnp.bfloat16)
    # First layer on the MXU, f32 accumulation, single accumulated expression:
    #   hT = W1_s @ sT + W1_a @ aT   -> (H, tb)
    h = (jnp.dot(w1s_ref[...], s, preferred_element_type=jnp.float32)
         + jnp.dot(w1a_ref[...], a, preferred_element_type=jnp.float32))
    h += b1_ref[...]                   # (H, 1) broadcast over lanes (f32)
    h = jnp.maximum(h, 0.0)            # ReLU on the VPU (f32)
    # Second layer: (1, H) @ (H, tb) -> lane-dense (1, tb) row on the MXU.
    out = jnp.dot(w2_ref[...], h.astype(jnp.bfloat16),
                  preferred_element_type=jnp.float32)
    out_ref[...] = (out + b2_ref[0, 0]).astype(out_ref.dtype)


def _pick_batch_tile(batch, tb_max):
    """Lane (batch) tile: a multiple of 128 (or the full batch), and >=2 tiles
    whenever possible so v7x's two TensorCores both get work."""
    if batch < 256:
        return batch, 1                          # single full-array tile
    if batch <= tb_max:
        tb = min(tb_max, ((pl.cdiv(batch, 2) + 127) // 128) * 128)
    else:
        tb = tb_max
    return tb, pl.cdiv(batch, tb)


def critic_forward(state, action, params, *, tb=2048):
    """state: (B, S), action: (B, A) -> (B, 1) f32.

    `params` must already be in kernel layout (see prepare_critic_params).
    NOTE: the kernel consumes batch-minor (S, B)/(A, B) operands; if the
    upstream producer can emit that layout (and/or bf16) directly, drop the
    transposes below and the extra HBM pass they imply.
    """
    w1_s, w1_a = params["w1_s"], params["w1_a"]
    b1, w2_row, b2 = params["b1"], params["w2_row"], params["b2"]
    B, S = state.shape
    _, A = action.shape
    H = w1_s.shape[0]

    state_t = state.T      # (S, B) — batch on lanes
    action_t = action.T    # (A, B)

    tb, n_tiles = _pick_batch_tile(B, tb)
    b_pad = n_tiles * tb   # output fully covered; input tail block is ragged

    out = pl.pallas_call(
        _critic_kernel,
        out_shape=jax.ShapeDtypeStruct((1, b_pad), jnp.float32),
        grid=(n_tiles,),
        in_specs=[
            pl.BlockSpec((S, tb), lambda i: (0, i)),   # streamed batch tiles
            pl.BlockSpec((A, tb), lambda i: (0, i)),
            pl.BlockSpec((H, S), lambda i: (0, 0)),    # VMEM-resident weights
            pl.BlockSpec((H, A), lambda i: (0, 0)),
            pl.BlockSpec((H, 1), lambda i: (0, 0)),    # b1 column
            pl.BlockSpec((1, H), lambda i: (0, 0)),    # w2 row
            pl.BlockSpec(memory_space=pltpu.MemorySpace.SMEM),  # scalar b2
        ],
        out_specs=pl.BlockSpec((1, tb), lambda i: (0, i)),      # lane-dense
        compiler_params=pltpu.CompilerParams(
            # TODO(synk): on v7x, evaluate pltpu.CORE_PARALLEL on this axis.
            dimension_semantics=("parallel",),
            vmem_limit_bytes=48 * 1024 * 1024,
        ),
    )(state_t, action_t, w1_s, w1_a, b1, w2_row, b2)

    return out[0, :B].reshape(B, 1)


def init_critic_params(key, inp_size, hidden=256):
    """PyTorch nn.Linear-style params ((out, in) weights), f32."""
    k1, k2, k3, k4 = jax.random.split(key, 4)
    bound1 = 1.0 / jnp.sqrt(inp_size)
    bound2 = 1.0 / jnp.sqrt(hidden)
    return {
        "w1": jax.random.uniform(k1, (hidden, inp_size), jnp.float32,
                                 -bound1, bound1),
        "b1": jax.random.uniform(k2, (hidden,), jnp.float32, -bound1, bound1),
        "w2": jax.random.uniform(k3, (1, hidden), jnp.float32,
                                 -bound2, bound2),
        "b2": jax.random.uniform(k4, (1,), jnp.float32, -bound2, bound2),
    }


def prepare_critic_params(torch_params, state_dim):
    """One-time hoist of all weight munging (split / reshape / bf16 cast).

    W1 stays in its native PyTorch (H, S+A) layout (no transpose needed for
    the batch-on-lanes kernel); it is only split into its state/action column
    blocks, which fuses the concat algebraically."""
    w1, b1 = torch_params["w1"], torch_params["b1"]
    w2, b2 = torch_params["w2"], torch_params["b2"]
    H = w1.shape[0]
    return {
        "w1_s": w1[:, :state_dim].astype(jnp.bfloat16),   # (H, S)
        "w1_a": w1[:, state_dim:].astype(jnp.bfloat16),   # (H, A)
        "b1": b1.reshape(H, 1).astype(jnp.float32),       # (H, 1)
        "w2_row": w2.reshape(1, H).astype(jnp.bfloat16),  # (1, H)
        "b2": b2.reshape(1, 1).astype(jnp.float32),       # (1, 1) -> SMEM
    }


def critic_reference(state, action, torch_params):
    x = jnp.concatenate([state, action], axis=-1)
    h = jax.nn.relu(x @ torch_params["w1"].T + torch_params["b1"])
    return h @ torch_params["w2"].T + torch_params["b2"]


if __name__ == "__main__":
    key = jax.random.PRNGKey(0)
    k_params, k_state, k_action = jax.random.split(key, 3)

    batch = 8
    state_dim = 24
    action_dim = 8
    hidden = 32
    inp_size = state_dim + action_dim

    torch_params = init_critic_params(k_params, inp_size, hidden)
    kernel_params = jax.tree_util.tree_map(
        jax.device_put, prepare_critic_params(torch_params, state_dim))

    state = jax.random.normal(k_state, (batch, state_dim), jnp.float32)
    action = jax.random.normal(k_action, (batch, action_dim), jnp.float32)

    critic = jax.jit(functools.partial(critic_forward, tb=2048))
    out = critic(state, action, kernel_params)
    out = jax.block_until_ready(out)

    ref = critic_reference(state, action, torch_params)
    assert out.shape == (batch, 1)
    # bf16 MXU operands with f32 accumulation -> slightly looser tolerance.
    assert jnp.allclose(out, ref, atol=5e-2, rtol=5e-2), (
        f"max abs err {jnp.max(jnp.abs(out - ref))}")

    print("KERNEL_OK")
</pallas_src>

<mosaic_0001>
module attributes {stable_mosaic.version = 11 : i64} {
  func.func @_critic_kernel(%arg0: i32, %arg1: memref<24x8xf32, #tpu.memory_space<vmem>>, %arg2: memref<8x8xf32, #tpu.memory_space<vmem>>, %arg3: memref<32x24xbf16, #tpu.memory_space<vmem>>, %arg4: memref<32x8xbf16, #tpu.memory_space<vmem>>, %arg5: memref<32x1xf32, #tpu.memory_space<vmem>>, %arg6: memref<1x32xbf16, #tpu.memory_space<vmem>>, %arg7: memref<1x1xf32, #tpu.memory_space<smem>>, %arg8: memref<1x8xf32, #tpu.memory_space<vmem>>) attributes {dimension_semantics = [#tpu.dimension_semantics<parallel>], iteration_bounds = array<i64: 1>, scalar_prefetch = 0 : i64, scratch_operands = 0 : i64, tpu.core_type = #tpu.core_type<tc>, window_params = [{transform_indices = @transform_0, window_bounds = array<i64: 24, 8>}, {transform_indices = @transform_1, window_bounds = array<i64: 8, 8>}, {pipeline_mode = #tpu.pipeline_mode<synchronous>, transform_indices = @transform_2, window_bounds = array<i64: 32, 24>}, {pipeline_mode = #tpu.pipeline_mode<synchronous>, transform_indices = @transform_3, window_bounds = array<i64: 32, 8>}, {pipeline_mode = #tpu.pipeline_mode<synchronous>, transform_indices = @transform_4, window_bounds = array<i64: 32, 1>}, {pipeline_mode = #tpu.pipeline_mode<synchronous>, transform_indices = @transform_5, window_bounds = array<i64: 1, 32>}, {transform_indices = @transform_6, window_bounds = array<i64: 1, 1>}, {transform_indices = @transform_7, window_bounds = array<i64: 1, 8>}]} {
    %c0 = arith.constant 0 : index
    %c0_0 = arith.constant 0 : index
    %0 = vector.load %arg1[%c0, %c0_0] : memref<24x8xf32, #tpu.memory_space<vmem>>, vector<24x8xf32>
    %1 = arith.truncf %0 : vector<24x8xf32> to vector<24x8xbf16>
    %c0_1 = arith.constant 0 : index
    %c0_2 = arith.constant 0 : index
    %2 = vector.load %arg2[%c0_1, %c0_2] : memref<8x8xf32, #tpu.memory_space<vmem>>, vector<8x8xf32>
    %3 = arith.truncf %2 : vector<8x8xf32> to vector<8x8xbf16>
    %c0_3 = arith.constant 0 : index
    %c0_4 = arith.constant 0 : index
    %4 = vector.load %arg3[%c0_3, %c0_4] : memref<32x24xbf16, #tpu.memory_space<vmem>>, vector<32x24xbf16>
    %cst = arith.constant dense<0.000000e+00> : vector<32x8xf32>
    %5 = tpu.matmul %4, %1, %cst {dimension_numbers = #tpu.dot_dimension_numbers<[1], [0], [0], [1], [0, 0, 1, 1], [], []>} : vector<32x24xbf16>, vector<24x8xbf16>, vector<32x8xf32> -> vector<32x8xf32>
    %c0_5 = arith.constant 0 : index
    %c0_6 = arith.constant 0 : index
    %6 = vector.load %arg4[%c0_5, %c0_6] : memref<32x8xbf16, #tpu.memory_space<vmem>>, vector<32x8xbf16>
    %cst_7 = arith.constant dense<0.000000e+00> : vector<32x8xf32>
    %7 = tpu.matmul %6, %3, %cst_7 {dimension_numbers = #tpu.dot_dimension_numbers<[1], [0], [0], [1], [0, 0, 1, 1], [], []>} : vector<32x8xbf16>, vector<8x8xbf16>, vector<32x8xf32> -> vector<32x8xf32>
    %8 = arith.addf %5, %7 : vector<32x8xf32>
    %c0_8 = arith.constant 0 : index
    %c0_9 = arith.constant 0 : index
    %9 = vector.load %arg5[%c0_8, %c0_9] : memref<32x1xf32, #tpu.memory_space<vmem>>, vector<32x1xf32>
    %10 = vector.broadcast %9 : vector<32x1xf32> to vector<32x8xf32>
    %11 = arith.addf %8, %10 : vector<32x8xf32>
    %cst_10 = arith.constant 0.000000e+00 : f32
    %12 = vector.broadcast %cst_10 : f32 to vector<32x8xf32>
    %13 = arith.maximumf %11, %12 : vector<32x8xf32>
    %c0_11 = arith.constant 0 : index
    %c0_12 = arith.constant 0 : index
    %14 = vector.load %arg6[%c0_11, %c0_12] : memref<1x32xbf16, #tpu.memory_space<vmem>>, vector<1x32xbf16>
    %15 = arith.truncf %13 : vector<32x8xf32> to vector<32x8xbf16>
    %cst_13 = arith.constant dense<0.000000e+00> : vector<1x8xf32>
    %16 = tpu.matmul %14, %15, %cst_13 {dimension_numbers = #tpu.dot_dimension_numbers<[1], [0], [0], [1], [0, 0, 1, 1], [], []>} : vector<1x32xbf16>, vector<32x8xbf16>, vector<1x8xf32> -> vector<1x8xf32>
    %c0_14 = arith.constant 0 : index
    %c0_15 = arith.constant 0 : index
    %17 = memref.load %arg7[%c0_14, %c0_15] : memref<1x1xf32, #tpu.memory_space<smem>>
    %18 = vector.broadcast %17 : f32 to vector<1x8xf32>
    %19 = arith.addf %16, %18 : vector<1x8xf32>
    %c0_16 = arith.constant 0 : index
    %c0_17 = arith.constant 0 : index
    %20 = vector.load %arg8[%c0_16, %c0_17] : memref<1x8xf32, #tpu.memory_space<vmem>>, vector<1x8xf32>
    tpu.vector_store %arg8[%c0_16, %c0_17], %19 {strides = array<i32>} : memref<1x8xf32, #tpu.memory_space<vmem>>, vector<1x8xf32>,
    return
  }
  func.func @transform_0(%arg0: i32) -> (i32, i32) {
    %c0_i32 = arith.constant 0 : i32
    %c0_i32_0 = arith.constant 0 : i32
    return %c0_i32, %arg0 : i32, i32
  }
  func.func @transform_1(%arg0: i32) -> (i32, i32) {
    %c0_i32 = arith.constant 0 : i32
    %c0_i32_0 = arith.constant 0 : i32
    return %c0_i32, %arg0 : i32, i32
  }
  func.func @transform_2(%arg0: i32) -> (i32, i32) {
    %c0_i32 = arith.constant 0 : i32
    %c0_i32_0 = arith.constant 0 : i32
    %c0_i32_1 = arith.constant 0 : i32
    return %c0_i32, %c0_i32_0 : i32, i32
  }
  func.func @transform_3(%arg0: i32) -> (i32, i32) {
    %c0_i32 = arith.constant 0 : i32
    %c0_i32_0 = arith.constant 0 : i32
    %c0_i32_1 = arith.constant 0 : i32
    return %c0_i32, %c0_i32_0 : i32, i32
  }
  func.func @transform_4(%arg0: i32) -> (i32, i32) {
    %c0_i32 = arith.constant 0 : i32
    %c0_i32_0 = arith.constant 0 : i32
    %c0_i32_1 = arith.constant 0 : i32
    return %c0_i32, %c0_i32_0 : i32, i32
  }
  func.func @transform_5(%arg0: i32) -> (i32, i32) {
    %c0_i32 = arith.constant 0 : i32
    %c0_i32_0 = arith.constant 0 : i32
    %c0_i32_1 = arith.constant 0 : i32
    return %c0_i32, %c0_i32_0 : i32, i32
  }
  func.func @transform_6(%arg0: i32) -> (i32, i32) {
    %c0_i32 = arith.constant 0 : i32
    %c0_i32_0 = arith.constant 0 : i32
    %c0_i32_1 = arith.constant 0 : i32
    return %c0_i32, %c0_i32_0 : i32, i32
  }
  func.func @transform_7(%arg0: i32) -> (i32, i32) {
    %c0_i32 = arith.constant 0 : i32
    %c0_i32_0 = arith.constant 0 : i32
    return %c0_i32, %arg0 : i32, i32
  }
}

</mosaic_0001>

<llo_original>
// kernel: critic_forward.1
$region0: #{critic_forward.1}
  #allocation0 [shape = 'u32[]', space=smem, size = 0x4, offset = 0x4, fixed_abs, tag = 'smem constant byte address 0x4 - core index']
  #allocation1 [shape = 'u32[144,128]{1,0:T(1,128)}', space=vmem, size = 0x12000, scoped, tag = 'internal scratch']
  #allocation2 [shape = 'f32[1,1]{1,0:T(1,128)S(6)}', space=smem, size = 0x200, scoped, tag = 'scoped memory for critic_forward.1']
  %s0 = inlined_call_operand.vmem [shape: f32[24,8], index: 0, kind: input, shape index: {}]
  %s1 = inlined_call_operand.vmem [shape: f32[8,8], index: 1, kind: input, shape index: {}]
  %s2 = inlined_call_operand.vmem [shape: bf16[32,24], index: 2, kind: input, shape index: {}]
  %s3 = inlined_call_operand.vmem [shape: bf16[32,8], index: 3, kind: input, shape index: {}]
  %s4 = inlined_call_operand.vmem [shape: f32[32,1], index: 4, kind: input, shape index: {}]
  %s5 = inlined_call_operand.vmem [shape: bf16[1,32], index: 5, kind: input, shape index: {}]
  %s6 = inlined_call_operand.<no memory space> [shape: f32[1,1], index: 6, kind: input, shape index: {}]
  %s7 = inlined_call_operand.hbm [shape: f32[1,8], index: 7, kind: output, shape index: {}]
  %s8 = sld [smem:[#allocation0]]
  $region38: #{critic_forward.1} parent=0
    _
  %s10 = ssub.s32 1, %s8
  %s11 = scalar_select 0, %s10, %s8
  %12 = sst [smem:[#allocation2]] %s6
  $region1: #{critic_forward.1} parent=0
    #allocation3 [shape = 'u8[512]{0}', space=vmem, size = 0x400, scoped, tag = 'output window, operand 0, single buffered']
    #allocation4 [shape = 's32[1]{0}', space=sflag, size = 0x4, scoped, tag = 'scoped memory for critic_forward.1']
    %13 = vsyncpa [#allocation4], 0
    // Predicated region
    $region2: #{critic_forward.1} parent=1 // pred_check
      _
    $region3: #{critic_forward.1} parent=1 // pred_check_branch
      %15 = sbr.rel (0) target = $region5
    $region4: #{critic_forward.1} parent=1 // pred_region
      _
    $region5: #{critic_forward.1} parent=1 // pred_fallthru
      _
    // Predicated region
    $region6: #{critic_forward.1} parent=1 // pred_check
      _
    $region7: #{critic_forward.1} parent=1 // pred_check_branch
      %17 = sbr.rel (0) target = $region9
    $region8: #{critic_forward.1} parent=1 // pred_region
      _
    $region9: #{critic_forward.1} parent=1 // pred_fallthru
      _
    // Predicated region
    $region10: #{critic_forward.1} parent=1 // pred_check
      _
    $region11: #{critic_forward.1} parent=1 // pred_check_branch
      %19 = sbr.rel (0) target = $region13
    $region12: #{critic_forward.1} parent=1 // pred_region
      _
    $region13: #{critic_forward.1} parent=1 // pred_fallthru
      _
    // Predicated region
    $region14: #{critic_forward.1} parent=1 // pred_check
      _
    $region15: #{critic_forward.1} parent=1 // pred_check_branch
      %21 = sbr.rel (0) target = $region17
    $region16: #{critic_forward.1} parent=1 // pred_region
      _
    $region17: #{critic_forward.1} parent=1 // pred_fallthru
      _
    // Predicated region
    $region18: #{critic_forward.1} parent=1 // pred_check
      _
    $region19: #{critic_forward.1} parent=1 // pred_check_branch
      %23 = sbr.rel (0) target = $region21
    $region20: #{critic_forward.1} parent=1 // pred_region
      _
    $region21: #{critic_forward.1} parent=1 // pred_fallthru
      _
    // Predicated region
    $region22: #{critic_forward.1} parent=1 // pred_check
      _
    $region23: #{critic_forward.1} parent=1 // pred_check_branch
      %25 = sbr.rel (0) target = $region25
    $region24: #{critic_forward.1} parent=1 // pred_region
      _
    $region25: #{critic_forward.1} parent=1 // pred_fallthru
      _
    // Predicated region
    $region26: #{critic_forward.1} parent=1 // pred_check
      _
    $region27: #{critic_forward.1} parent=1 // pred_check_branch
      %27 = sbr.rel (0) target = $region29
    $region28: #{critic_forward.1} parent=1 // pred_region
      _
    $region29: #{critic_forward.1} parent=1 // pred_fallthru
      _
    %v29 = vld [vmem:[%s0] sm:$0xff]
    %v30 = vld [vmem:[%s0 + $0x8] sm:$0xff]
    %v31 = vld [vmem:[%s0 + $0x10] sm:$0xff]
    %v32 = vpack.c.bf16 %v30, %v29
    %v33 = vpack.c.bf16 %v31, %v31
    %v34 = vld [vmem:[%s1] sm:$0xff]
    %v35 = vpack.c.bf16 %v34, %v34
    %v36 = vld [vmem:[%s2] sm:$0xf]
    %v37 = vld [vmem:[%s2 + $0x4] sm:$0xf]
    %v38 = vld [vmem:[%s2 + $0x8] sm:$0xf]
    %v39 = vld [vmem:[%s2 + $0xc] sm:$0xf]
    %v40 = vld [vmem:[%s3] sm:$0xf]
    %v41 = vld [vmem:[%s3 + $0x4] sm:$0xf]
    %v42 = vld [vmem:[%s3 + $0x8] sm:$0xf]
    %v43 = vld [vmem:[%s3 + $0xc] sm:$0xf]
    %v48 = vunpack.c.l.b16 %v40
    %v49 = vunpack.c.l.b16 %v41
    %v50 = vunpack.c.l.b16 %v42
    %v51 = vunpack.c.l.b16 %v43
    %v52 = vpack.c.b16 %v49, %v48
    %v53 = vpack.c.b16 %v51, %v50
    %vm54 = vcmask 64512
    %v56 = vsel %vm54, %v52, 0
    %v59 = vsel %vm54, %v53, 0
    %vm61 = vcmask 1043456
    %v63 = vsel %vm61, %v35, 0
    %65 = vmatprep.subr.bf16.mxu0 0
    %66 = vmatpush1.bf16.msra.mxu0 0
    %67 = vmatprep.subr.bf16.mxu0 0
    %68 = vmatpush1.bf16.msra.mxu0 0
    %69 = vmatprep.subr.bf16.mxu0 0
    %70 = vmatpush1.bf16.msra.mxu0 0
    %71 = vmatprep.subr.bf16.mxu0 0
    %72 = vmatpush1.bf16.msra.mxu0 0
    %73 = vmatprep.subr.bf16.mxu0 0
    %74 = vmatpush1.bf16.msra.mxu0 0
    %75 = vmatprep.subr.bf16.mxu0 0
    %76 = vmatpush1.bf16.msra.mxu0 0
    %77 = vmatprep.subr.bf16.mxu0 0
    %78 = vmatpush1.bf16.msra.mxu0 0
    %79 = vmatprep.subr.bf16.mxu0 0
    %80 = vmatpush1.bf16.msra.mxu0 %v63
    %81 = vmatprep.subr.bf16.mxu0 0
    %82 = vmatpush2.bf16.msra.mxu0 0
    %83 = vmatprep.subr.bf16.mxu0 0
    %84 = vmatpush2.bf16.msra.mxu0 0
    %85 = vmatprep.subr.bf16.mxu0 0
    %86 = vmatpush2.bf16.msra.mxu0 0
    %87 = vmatprep.subr.bf16.mxu0 0
    %88 = vmatpush2.bf16.msra.mxu0 0
    %89 = vmatprep.subr.bf16.mxu0 0
    %90 = vmatpush2.bf16.msra.mxu0 0
    %91 = vmatprep.subr.bf16.mxu0 0
    %92 = vmatpush2.bf16.msra.mxu0 0
    %93 = vmatprep.subr.bf16.mxu0 0
    %94 = vmatpush2.bf16.msra.mxu0 0
    %95 = vmatprep.subr.bf16.mxu0 0
    %96 = vmatpush2.bf16.msra.mxu0 0
    %97 = vmatprep.mubr.bf16.mxu0 0
    %98 = vmatmul.mubr.bf16.gmra.mxu0 %v56
    %v99 = vpop.f32.mrf.mxu0
    %v100 = vadd.f32 0.0, %v99
    %v101 = vpop.f32.mrf.mxu0
    %v102 = vpop.f32.mrf.mxu0
    %v103 = vadd.f32 0.0, %v102
    %v104 = vpop.f32.mrf.mxu0
    %105 = vmatprep.mubr.bf16.mxu0 0
    %106 = vmatmul.mubr.bf16.gmra.mxu0 %v59
    %v107 = vpop.f32.mrf.mxu0
    %v108 = vadd.f32 0.0, %v107
    %v109 = vpop.f32.mrf.mxu0
    %v110 = vpop.f32.mrf.mxu0
    %v111 = vadd.f32 0.0, %v110
    %v112 = vpop.f32.mrf.mxu0
    %113 = vdwg.mxu0
    %v118 = vunpack.c.l.b16 %v36
    %v119 = vunpack.c.l.b16 %v37
    %v120 = vunpack.c.l.b16 %v38
    %v121 = vunpack.c.l.b16 %v39
    %v122 = vpack.c.b16 %v119, %v118
    %v123 = vpack.c.b16 %v121, %v120
    %vm124 = vcmask 195584
    %v126 = vsel %vm124, %v122, 0
    %v129 = vsel %vm124, %v123, 0
    %v132 = vsel %vm61, %v33, 0
    %134 = vmatprep.subr.bf16.mxu0 0
    %135 = vmatpush1.bf16.msra.mxu0 0
    %136 = vmatprep.subr.bf16.mxu0 0
    %137 = vmatpush1.bf16.msra.mxu0 0
    %138 = vmatprep.subr.bf16.mxu0 0
    %139 = vmatpush1.bf16.msra.mxu0 0
    %140 = vmatprep.subr.bf16.mxu0 0
    %141 = vmatpush1.bf16.msra.mxu0 0
    %142 = vmatprep.subr.bf16.mxu0 0
    %143 = vmatpush1.bf16.msra.mxu0 0
    %144 = vmatprep.subr.bf16.mxu0 0
    %145 = vmatpush1.bf16.msra.mxu0 0
    %146 = vmatprep.subr.bf16.mxu0 0
    %147 = vmatpush1.bf16.msra.mxu0 %v132
    %148 = vmatprep.subr.bf16.mxu0 0
    %149 = vmatpush1.bf16.msra.mxu0 %v32
    %150 = vmatprep.subr.bf16.mxu0 0
    %151 = vmatpush2.bf16.msra.mxu0 0
    %152 = vmatprep.subr.bf16.mxu0 0
    %153 = vmatpush2.bf16.msra.mxu0 0
    %154 = vmatprep.subr.bf16.mxu0 0
    %155 = vmatpush2.bf16.msra.mxu0 0
    %156 = vmatprep.subr.bf16.mxu0 0
    %157 = vmatpush2.bf16.msra.mxu0 0
    %158 = vmatprep.subr.bf16.mxu0 0
    %159 = vmatpush2.bf16.msra.mxu0 0
    %160 = vmatprep.subr.bf16.mxu0 0
    %161 = vmatpush2.bf16.msra.mxu0 0
    %162 = vmatprep.subr.bf16.mxu0 0
    %163 = vmatpush2.bf16.msra.mxu0 0
    %164 = vmatprep.subr.bf16.mxu0 0
    %165 = vmatpush2.bf16.msra.mxu0 0
    %166 = vmatprep.mubr.bf16.mxu0 0
    %167 = vmatmul.mubr.bf16.gmra.mxu0 %v126
    %v168 = vpop.f32.mrf.mxu0
    %v169 = vadd.f32 %v100, %v168
    %v170 = vpop.f32.mrf.mxu0
    %v171 = vpop.f32.mrf.mxu0
    %v172 = vadd.f32 %v103, %v171
    %v173 = vpop.f32.mrf.mxu0
    %174 = vmatprep.mubr.bf16.mxu0 0
    %175 = vmatmul.mubr.bf16.gmra.mxu0 %v129
    %v176 = vpop.f32.mrf.mxu0
    %v177 = vadd.f32 %v108, %v176
    %v178 = vpop.f32.mrf.mxu0
    %v179 = vpop.f32.mrf.mxu0
    %v180 = vadd.f32 %v111, %v179
    %v181 = vpop.f32.mrf.mxu0
    %182 = vdwg.mxu0
    %v183 = vld [vmem:[%s4] sm:$0xff]
    %v184 = vld [vmem:[%s4 + $0x8] sm:$0xff]
    %v185 = vld [vmem:[%s4 + $0x10] sm:$0xff]
    %v186 = vld [vmem:[%s4 + $0x18] sm:$0xff]
    %188 = vset.pattern.permute.xlu0 0
    %189 = vperm.xlu0 %188, %v183
    %v190 = vpop.permute.xlu0 %189
    %193 = vset.pattern.permute.xlu0 0
    %194 = vperm.xlu0 %193, %v184
    %v195 = vpop.permute.xlu0 %194
    %198 = vset.pattern.permute.xlu0 0
    %199 = vperm.xlu0 %198, %v185
    %v200 = vpop.permute.xlu0 %199
    %203 = vset.pattern.permute.xlu0 0
    %204 = vperm.xlu0 %203, %v186
    %v205 = vpop.permute.xlu0 %204
    %v207 = vadd.f32 %v169, %v190
    %v208 = vadd.f32 %v172, %v195
    %v209 = vadd.f32 %v177, %v200
    %v210 = vadd.f32 %v180, %v205
    %v211 = vmax.f32 %v207, 0.0
    %v212 = vmax.f32 %v208, 0.0
    %v213 = vmax.f32 %v209, 0.0
    %v214 = vmax.f32 %v210, 0.0
    %v215 = vld [vmem:[%s5] sm:$0x1]
    %v216 = vpack.c.bf16 %v212, %v211
    %v217 = vpack.c.bf16 %v214, %v213
    %s218 = sld [smem:[#allocation2]]
    %v219 = vstv %s218
    %vm220 = vcmask 261120
    %v222 = vsel %vm220, %v215, 0
    %224 = vmatprep.subr.bf16.mxu0 0
    %225 = vmatpush1.bf16.msra.mxu0 0
    %226 = vmatprep.subr.bf16.mxu0 0
    %227 = vmatpush1.bf16.msra.mxu0 0
    %228 = vmatprep.subr.bf16.mxu0 0
    %229 = vmatpush1.bf16.msra.mxu0 0
    %230 = vmatprep.subr.bf16.mxu0 0
    %231 = vmatpush1.bf16.msra.mxu0 0
    %232 = vmatprep.subr.bf16.mxu0 0
    %233 = vmatpush1.bf16.msra.mxu0 0
    %234 = vmatprep.subr.bf16.mxu0 0
    %235 = vmatpush1.bf16.msra.mxu0 0
    %236 = vmatprep.subr.bf16.mxu0 0
    %237 = vmatpush1.bf16.msra.mxu0 %v217
    %238 = vmatprep.subr.bf16.mxu0 0
    %239 = vmatpush1.bf16.msra.mxu0 %v216
    %240 = vmatprep.subr.bf16.mxu0 0
    %241 = vmatpush2.bf16.msra.mxu0 0
    %242 = vmatprep.subr.bf16.mxu0 0
    %243 = vmatpush2.bf16.msra.mxu0 0
    %244 = vmatprep.subr.bf16.mxu0 0
    %245 = vmatpush2.bf16.msra.mxu0 0
    %246 = vmatprep.subr.bf16.mxu0 0
    %247 = vmatpush2.bf16.msra.mxu0 0
    %248 = vmatprep.subr.bf16.mxu0 0
    %249 = vmatpush2.bf16.msra.mxu0 0
    %250 = vmatprep.subr.bf16.mxu0 0
    %251 = vmatpush2.bf16.msra.mxu0 0
    %252 = vmatprep.subr.bf16.mxu0 0
    %253 = vmatpush2.bf16.msra.mxu0 0
    %254 = vmatprep.subr.bf16.mxu0 0
    %255 = vmatpush2.bf16.msra.mxu0 0
    %256 = vmatprep.mubr.bf16.mxu0 0
    %257 = vmatmul.mubr.bf16.gmra.mxu0 %v222
    %v258 = vpop.f32.mrf.mxu0
    %v259 = vadd.f32 %v219, %v258
    %v260 = vpop.f32.mrf.mxu0
    %v261 = vpop.f32.mrf.mxu0
    %v262 = vpop.f32.mrf.mxu0
    %263 = vdwg.mxu0
    %vm264 = vcmask 57344
    %265 = vst.msk [vmem:[#allocation3] sm:$0x1] %vm264, %v259
    // Predicated region
    $region30: #{critic_forward.1} parent=1 // pred_check
      _
    $region31: #{critic_forward.1} parent=1 // pred_check_branch
      %267 = sbr.rel (0) target = $region33
    $region32: #{critic_forward.1} parent=1 // pred_region
      %s269 = ssub.s32 16, 16
      %270 = vsyncadd [#allocation4], %s269
      %s272 = sshll.u32 [#allocation3], 4
      %s273 = int_to_ptr.vmem [resolvable:$true] %s272
      %275 = dma.vmem_to_hbm [thread:$0]  %s273, 16, %s7, [#allocation4]
    $region33: #{critic_forward.1} parent=1 // pred_fallthru
      _
    // Predicated region
    $region34: #{critic_forward.1} parent=1 // pred_check
      _
    $region35: #{critic_forward.1} parent=1 // pred_check_branch
      %277 = sbr.rel (0) target = $region37
    $region36: #{critic_forward.1} parent=1 // pred_region
      %278 = dma.done [#allocation4], 16
    $region37: #{critic_forward.1} parent=1 // pred_fallthru
      _
    %279 = vsyncpa [#allocation4], 1

</llo_original>
